<compile_context>
chip_gen: v5e
topology: v5e:2x2
jax: 0.10.0
libtpu: 0.0.40
codegen_flags: <defaults>
</compile_context>

<pallas_src>
import jax
import jax.numpy as jnp
from jax.experimental import pallas as pl
from jax.experimental.pallas import tpu as pltpu


def _round_up(n, m):
    return ((n + m - 1) // m) * m


def _mlp_kernel(x_ref, w1_ref, b1_ref, w2_ref, b2_ref, o_ref):
    # layer1: ReLU (f32) -> Linear(in, 256) with bf16 operands, f32 accumulation.
    x = jnp.maximum(x_ref[...], 0.0).astype(jnp.bfloat16)
    h = jnp.dot(x, w1_ref[...], preferred_element_type=jnp.float32) + b1_ref[...]
    # layer2: ReLU (f32) -> Linear(256, out) with bf16 operands, f32 accumulation.
    h = jnp.maximum(h, 0.0).astype(jnp.bfloat16)
    o_ref[...] = (
        jnp.dot(h, w2_ref[...], preferred_element_type=jnp.float32) + b2_ref[...]
    )


def point_cloud_classical_forward(
    x, w1, b1, w2, b2, *, max_block_b=2048, num_cores=2, min_steps_per_core=4
):
    """x: [B, in]; w1: [in, 256]; b1: [1, 256]; w2: [256, out]; b2: [1, out]."""
    B, in_f = x.shape
    hidden = w1.shape[1]
    out_dim = w2.shape[1]

    # bf16 MXU operands (tiny one-pass cast over ~200 KiB of weights).
    x_f = x.astype(jnp.float32)
    w1_bf = w1.astype(jnp.bfloat16)
    w2_bf = w2.astype(jnp.bfloat16)
    b1_f = b1.astype(jnp.float32)
    b2_f = b2.astype(jnp.float32)

    # ---- Batch tile: multiple of 8, sized so each TensorCore gets >= 4 grid
    # steps (pipelining), capped at 2048 rows to bound VMEM / DMA burst size. ----
    target = pl.cdiv(B, num_cores * min_steps_per_core)
    tb = max(8, min(max_block_b, _round_up(target, 8)))
    grid = (pl.cdiv(B, tb),)  # partial edge block handled by Pallas (masked write)

    # Advisory cost estimate (helps XLA schedule the custom call).
    flops = 2 * B * (in_f * hidden + hidden * out_dim)
    bytes_accessed = (
        4 * (B * in_f + B * out_dim + hidden + out_dim)
        + 2 * (in_f * hidden + hidden * out_dim)
    )
    cost = pl.CostEstimate(
        flops=flops, transcendentals=0, bytes_accessed=bytes_accessed
    )

    out = pl.pallas_call(
        _mlp_kernel,
        out_shape=jax.ShapeDtypeStruct((B, out_dim), jnp.float32),
        grid_spec=pltpu.PrefetchScalarGridSpec(
            num_scalar_prefetch=0,
            grid=grid,
            in_specs=[
                # x: tiled over the batch axis (auto double-buffered).
                pl.BlockSpec((tb, in_f), lambda i: (i, 0)),
                # Weights / biases: constant index_map -> VMEM-resident across steps.
                pl.BlockSpec((in_f, hidden), lambda i: (0, 0)),
                pl.BlockSpec((1, hidden), lambda i: (0, 0)),
                pl.BlockSpec((hidden, out_dim), lambda i: (0, 0)),
                pl.BlockSpec((1, out_dim), lambda i: (0, 0)),
            ],
            # Unpadded output block: out_dim equals the full last dim -> legal;
            # masked vst but 8x less HBM writeback than 128-lane padding.
            out_specs=pl.BlockSpec((tb, out_dim), lambda i: (i, 0)),
        ),
        compiler_params=pltpu.CompilerParams(
            # Batch tiles are independent -> shard across v7x's 2 TensorCores.
            dimension_semantics=("parallel",),
            vmem_limit_bytes=32 * 1024 * 1024,
        ),
        cost_estimate=cost,
    )(x_f, w1_bf, b1_f, w2_bf, b2_f)

    return out


def init_params(key, in_features, hidden, out_features):
    """Deterministic init mimicking torch.nn.Linear (uniform +/- 1/sqrt(fan_in))."""
    k1, k2, k3, k4 = jax.random.split(key, 4)
    bound1 = 1.0 / jnp.sqrt(in_features)
    bound2 = 1.0 / jnp.sqrt(hidden)
    w1 = jax.random.uniform(k1, (in_features, hidden), jnp.float32, -bound1, bound1)
    b1 = jax.random.uniform(k2, (1, hidden), jnp.float32, -bound1, bound1)
    w2 = jax.random.uniform(k3, (hidden, out_features), jnp.float32, -bound2, bound2)
    b2 = jax.random.uniform(k4, (1, out_features), jnp.float32, -bound2, bound2)
    return w1, b1, w2, b2


if __name__ == "__main__":
    key = jax.random.PRNGKey(0)
    kx, kp, kx2 = jax.random.split(key, 3)

    in_features, hidden, out_features = 64, 256, 16
    w1, b1, w2, b2 = init_params(kp, in_features, hidden, out_features)

    # Full-precision (f32) reference for semantics...
    def ref_f32(x):
        h = jnp.maximum(x, 0.0) @ w1 + b1
        return jnp.maximum(h, 0.0) @ w2 + b2

    # ...and a bf16-operand/f32-accumulate reference matching kernel arithmetic.
    def ref_bf16(x):
        xb = jnp.maximum(x, 0.0).astype(jnp.bfloat16)
        h = (
            jnp.dot(xb, w1.astype(jnp.bfloat16), preferred_element_type=jnp.float32)
            + b1
        )
        hb = jnp.maximum(h, 0.0).astype(jnp.bfloat16)
        return (
            jnp.dot(hb, w2.astype(jnp.bfloat16), preferred_element_type=jnp.float32)
            + b2
        )

    # Small batch (single grid step).
    x_small = jax.random.normal(kx, (8, in_features), jnp.float32)
    out_small = point_cloud_classical_forward(x_small, w1, b1, w2, b2)
    jax.block_until_ready(out_small)
    assert out_small.shape == (8, out_features)
    assert jnp.allclose(out_small, ref_bf16(x_small), atol=1e-5, rtol=1e-5)
    assert jnp.allclose(out_small, ref_f32(x_small), atol=3e-2, rtol=3e-2)

    # Ragged batch: exercises batch tiling, the partial edge block (no wrapper
    # zero-pad) and the parallel (megacore) grid axis.
    x_big = jax.random.normal(kx2, (1000, in_features), jnp.float32)
    out_big = point_cloud_classical_forward(x_big, w1, b1, w2, b2)
    jax.block_until_ready(out_big)
    assert out_big.shape == (1000, out_features)
    assert jnp.allclose(out_big, ref_bf16(x_big), atol=1e-4, rtol=1e-4)
    assert jnp.allclose(out_big, ref_f32(x_big), atol=3e-2, rtol=3e-2)

    print("KERNEL_OK")
</pallas_src>

<mosaic_0001>
module attributes {stable_mosaic.version = 11 : i64} {
  func.func @_mlp_kernel(%arg0: i32, %arg1: memref<8x64xf32, #tpu.memory_space<vmem>>, %arg2: memref<64x256xbf16, #tpu.memory_space<vmem>>, %arg3: memref<1x256xf32, #tpu.memory_space<vmem>>, %arg4: memref<256x16xbf16, #tpu.memory_space<vmem>>, %arg5: memref<1x16xf32, #tpu.memory_space<vmem>>, %arg6: memref<8x16xf32, #tpu.memory_space<vmem>>) attributes {dimension_semantics = [#tpu.dimension_semantics<parallel>], iteration_bounds = array<i64: 1>, scalar_prefetch = 0 : i64, scratch_operands = 0 : i64, tpu.core_type = #tpu.core_type<tc>, window_params = [{transform_indices = @transform_0, window_bounds = array<i64: 8, 64>}, {pipeline_mode = #tpu.pipeline_mode<synchronous>, transform_indices = @transform_1, window_bounds = array<i64: 64, 256>}, {pipeline_mode = #tpu.pipeline_mode<synchronous>, transform_indices = @transform_2, window_bounds = array<i64: 1, 256>}, {pipeline_mode = #tpu.pipeline_mode<synchronous>, transform_indices = @transform_3, window_bounds = array<i64: 256, 16>}, {pipeline_mode = #tpu.pipeline_mode<synchronous>, transform_indices = @transform_4, window_bounds = array<i64: 1, 16>}, {transform_indices = @transform_5, window_bounds = array<i64: 8, 16>}]} {
    %c0 = arith.constant 0 : index
    %c0_0 = arith.constant 0 : index
    %0 = vector.load %arg1[%c0, %c0_0] : memref<8x64xf32, #tpu.memory_space<vmem>>, vector<8x64xf32>
    %cst = arith.constant 0.000000e+00 : f32
    %1 = vector.broadcast %cst : f32 to vector<8x64xf32>
    %2 = arith.maximumf %0, %1 : vector<8x64xf32>
    %3 = arith.truncf %2 : vector<8x64xf32> to vector<8x64xbf16>
    %c0_1 = arith.constant 0 : index
    %c0_2 = arith.constant 0 : index
    %4 = vector.load %arg2[%c0_1, %c0_2] : memref<64x256xbf16, #tpu.memory_space<vmem>>, vector<64x256xbf16>
    %cst_3 = arith.constant dense<0.000000e+00> : vector<8x256xf32>
    %5 = tpu.matmul %3, %4, %cst_3 {dimension_numbers = #tpu.dot_dimension_numbers<[1], [0], [0], [1], [0, 0, 1, 1], [], []>} : vector<8x64xbf16>, vector<64x256xbf16>, vector<8x256xf32> -> vector<8x256xf32>
    %c0_4 = arith.constant 0 : index
    %c0_5 = arith.constant 0 : index
    %6 = vector.load %arg3[%c0_4, %c0_5] : memref<1x256xf32, #tpu.memory_space<vmem>>, vector<1x256xf32>
    %7 = vector.broadcast %6 : vector<1x256xf32> to vector<8x256xf32>
    %8 = arith.addf %5, %7 : vector<8x256xf32>
    %cst_6 = arith.constant 0.000000e+00 : f32
    %9 = vector.broadcast %cst_6 : f32 to vector<8x256xf32>
    %10 = arith.maximumf %8, %9 : vector<8x256xf32>
    %11 = arith.truncf %10 : vector<8x256xf32> to vector<8x256xbf16>
    %c0_7 = arith.constant 0 : index
    %c0_8 = arith.constant 0 : index
    %12 = vector.load %arg4[%c0_7, %c0_8] : memref<256x16xbf16, #tpu.memory_space<vmem>>, vector<256x16xbf16>
    %cst_9 = arith.constant dense<0.000000e+00> : vector<8x16xf32>
    %13 = tpu.matmul %11, %12, %cst_9 {dimension_numbers = #tpu.dot_dimension_numbers<[1], [0], [0], [1], [0, 0, 1, 1], [], []>} : vector<8x256xbf16>, vector<256x16xbf16>, vector<8x16xf32> -> vector<8x16xf32>
    %c0_10 = arith.constant 0 : index
    %c0_11 = arith.constant 0 : index
    %14 = vector.load %arg5[%c0_10, %c0_11] : memref<1x16xf32, #tpu.memory_space<vmem>>, vector<1x16xf32>
    %15 = vector.broadcast %14 : vector<1x16xf32> to vector<8x16xf32>
    %16 = arith.addf %13, %15 : vector<8x16xf32>
    %c0_12 = arith.constant 0 : index
    %c0_13 = arith.constant 0 : index
    %17 = vector.load %arg6[%c0_12, %c0_13] : memref<8x16xf32, #tpu.memory_space<vmem>>, vector<8x16xf32>
    tpu.vector_store %arg6[%c0_12, %c0_13], %16 {strides = array<i32>} : memref<8x16xf32, #tpu.memory_space<vmem>>, vector<8x16xf32>,
    return
  }
  func.func @transform_0(%arg0: i32) -> (i32, i32) {
    %c0_i32 = arith.constant 0 : i32
    %c0_i32_0 = arith.constant 0 : i32
    return %arg0, %c0_i32 : i32, i32
  }
  func.func @transform_1(%arg0: i32) -> (i32, i32) {
    %c0_i32 = arith.constant 0 : i32
    %c0_i32_0 = arith.constant 0 : i32
    %c0_i32_1 = arith.constant 0 : i32
    return %c0_i32, %c0_i32_0 : i32, i32
  }
  func.func @transform_2(%arg0: i32) -> (i32, i32) {
    %c0_i32 = arith.constant 0 : i32
    %c0_i32_0 = arith.constant 0 : i32
    %c0_i32_1 = arith.constant 0 : i32
    return %c0_i32, %c0_i32_0 : i32, i32
  }
  func.func @transform_3(%arg0: i32) -> (i32, i32) {
    %c0_i32 = arith.constant 0 : i32
    %c0_i32_0 = arith.constant 0 : i32
    %c0_i32_1 = arith.constant 0 : i32
    return %c0_i32, %c0_i32_0 : i32, i32
  }
  func.func @transform_4(%arg0: i32) -> (i32, i32) {
    %c0_i32 = arith.constant 0 : i32
    %c0_i32_0 = arith.constant 0 : i32
    %c0_i32_1 = arith.constant 0 : i32
    return %c0_i32, %c0_i32_0 : i32, i32
  }
  func.func @transform_5(%arg0: i32) -> (i32, i32) {
    %c0_i32 = arith.constant 0 : i32
    %c0_i32_0 = arith.constant 0 : i32
    return %arg0, %c0_i32 : i32, i32
  }
}

</mosaic_0001>

<llo_original>
// kernel: tpu_custom_call.1
$region0: #{tpu_custom_call.1}
  #allocation0 [shape = 'u32[]', space=smem, size = 0x4, offset = 0x4, fixed_abs, tag = 'smem constant byte address 0x4 - core index']
  #allocation1 [shape = 'u32[72,128]{1,0:T(1,128)}', space=vmem, size = 0x9000, scoped, tag = 'internal scratch']
  %s0 = inlined_call_operand.vmem [shape: f32[8,64], index: 0, kind: input, shape index: {}]
  %s1 = inlined_call_operand.vmem [shape: bf16[64,256], index: 1, kind: input, shape index: {}]
  %s2 = inlined_call_operand.vmem [shape: f32[1,256], index: 2, kind: input, shape index: {}]
  %s3 = inlined_call_operand.vmem [shape: bf16[256,16], index: 3, kind: input, shape index: {}]
  %s4 = inlined_call_operand.vmem [shape: f32[1,16], index: 4, kind: input, shape index: {}]
  %s5 = inlined_call_operand.hbm [shape: f32[8,16], index: 5, kind: output, shape index: {}]
  %s6 = sld [smem:[#allocation0]]
  $region30: #{tpu_custom_call.1} parent=0
    _
  %s8 = ssub.s32 1, %s6
  %s9 = scalar_select 0, %s8, %s6
  $region1: #{tpu_custom_call.1} parent=0
    #allocation2 [shape = 'u8[4096]{0}', space=vmem, size = 0x1000, scoped, tag = 'output window, operand 0, single buffered']
    #allocation3 [shape = 's32[1]{0}', space=sflag, size = 0x4, scoped, tag = 'scoped memory for tpu_custom_call.1']
    %10 = vsyncpa [#allocation3], 0
    // Predicated region
    $region2: #{tpu_custom_call.1} parent=1 // pred_check
      _
    $region3: #{tpu_custom_call.1} parent=1 // pred_check_branch
      %12 = sbr.rel (0) target = $region5
    $region4: #{tpu_custom_call.1} parent=1 // pred_region
      _
    $region5: #{tpu_custom_call.1} parent=1 // pred_fallthru
      _
    // Predicated region
    $region6: #{tpu_custom_call.1} parent=1 // pred_check
      _
    $region7: #{tpu_custom_call.1} parent=1 // pred_check_branch
      %14 = sbr.rel (0) target = $region9
    $region8: #{tpu_custom_call.1} parent=1 // pred_region
      _
    $region9: #{tpu_custom_call.1} parent=1 // pred_fallthru
      _
    // Predicated region
    $region10: #{tpu_custom_call.1} parent=1 // pred_check
      _
    $region11: #{tpu_custom_call.1} parent=1 // pred_check_branch
      %16 = sbr.rel (0) target = $region13
    $region12: #{tpu_custom_call.1} parent=1 // pred_region
      _
    $region13: #{tpu_custom_call.1} parent=1 // pred_fallthru
      _
    // Predicated region
    $region14: #{tpu_custom_call.1} parent=1 // pred_check
      _
    $region15: #{tpu_custom_call.1} parent=1 // pred_check_branch
      %18 = sbr.rel (0) target = $region17
    $region16: #{tpu_custom_call.1} parent=1 // pred_region
      _
    $region17: #{tpu_custom_call.1} parent=1 // pred_fallthru
      _
    // Predicated region
    $region18: #{tpu_custom_call.1} parent=1 // pred_check
      _
    $region19: #{tpu_custom_call.1} parent=1 // pred_check_branch
      %20 = sbr.rel (0) target = $region21
    $region20: #{tpu_custom_call.1} parent=1 // pred_region
      _
    $region21: #{tpu_custom_call.1} parent=1 // pred_fallthru
      _
    %v22 = vld [vmem:[%s0] sm:$0xff]
    %v23 = vmax.f32 %v22, 0.0
    %v24 = vpack.c.bf16 %v23, %v23
    %v25 = vld [vmem:[%s1] sm:$0xff]
    %v26 = vld [vmem:[%s1 + $0x8] sm:$0xff]
    %v27 = vld [vmem:[%s1 + $0x10] sm:$0xff]
    %v28 = vld [vmem:[%s1 + $0x18] sm:$0xff]
    %v29 = vld [vmem:[%s1 + $0x20] sm:$0xff]
    %v30 = vld [vmem:[%s1 + $0x28] sm:$0xff]
    %v31 = vld [vmem:[%s1 + $0x30] sm:$0xff]
    %v32 = vld [vmem:[%s1 + $0x38] sm:$0xff]
    %v33 = vld [vmem:[%s2] sm:$0x3]
    %v35 = vperm.slane %v33, 0
    %v36 = vperm.slane %v33, 1
    %v47 = vunpack.c.l.b16 %v25
    %v48 = vunpack.c.h.b16 %v25
    %v49 = vunpack.c.l.b16 %v26
    %v50 = vunpack.c.h.b16 %v26
    %v51 = vunpack.c.l.b16 %v27
    %v52 = vunpack.c.h.b16 %v27
    %v53 = vunpack.c.l.b16 %v28
    %v54 = vunpack.c.h.b16 %v28
    %v55 = vunpack.c.l.b16 %v29
    %v56 = vunpack.c.h.b16 %v29
    %v57 = vunpack.c.l.b16 %v30
    %v58 = vunpack.c.h.b16 %v30
    %v59 = vunpack.c.l.b16 %v31
    %v60 = vunpack.c.h.b16 %v31
    %v61 = vunpack.c.l.b16 %v32
    %v62 = vunpack.c.h.b16 %v32
    %v63 = vpack.c.b16 %v49, %v47
    %v64 = vpack.c.b16 %v50, %v48
    %v65 = vpack.c.b16 %v53, %v51
    %v66 = vpack.c.b16 %v54, %v52
    %v67 = vpack.c.b16 %v57, %v55
    %v68 = vpack.c.b16 %v58, %v56
    %v69 = vpack.c.b16 %v61, %v59
    %v70 = vpack.c.b16 %v62, %v60
    %vm79 = vcmask 523264
    %v81 = vsel %vm79, %v24, 0
    %83 = vmatpush.bf16.msra.mxu0 0
    %84 = vmatpush.bf16.msra.mxu0 0
    %85 = vmatpush.bf16.msra.mxu0 0
    %86 = vmatpush.bf16.msra.mxu0 0
    %87 = vmatpush.bf16.msra.mxu0 %v69
    %88 = vmatpush.bf16.msra.mxu0 %v67
    %89 = vmatpush.bf16.msra.mxu0 %v65
    %90 = vmatpush.bf16.msra.mxu0 %v63
    %91 = vmatmul.bf16.gmra.mxu0 %v81
    %v92 = vpop.f32.mrf.mxu0
    %v93 = vadd.f32 %v35, %v92
    %v94 = vpop.f32.mrf.mxu0
    %95 = vdwg.mxu0
    %96 = vmatpush.bf16.msra.mxu0 0
    %97 = vmatpush.bf16.msra.mxu0 0
    %98 = vmatpush.bf16.msra.mxu0 0
    %99 = vmatpush.bf16.msra.mxu0 0
    %100 = vmatpush.bf16.msra.mxu0 %v70
    %101 = vmatpush.bf16.msra.mxu0 %v68
    %102 = vmatpush.bf16.msra.mxu0 %v66
    %103 = vmatpush.bf16.msra.mxu0 %v64
    %104 = vmatmul.bf16.gmra.mxu0 %v81
    %v105 = vpop.f32.mrf.mxu0
    %v106 = vadd.f32 %v36, %v105
    %v107 = vpop.f32.mrf.mxu0
    %108 = vdwg.mxu0
    %v109 = vmax.f32 %v93, 0.0
    %v110 = vmax.f32 %v106, 0.0
    %v111 = vpack.c.bf16 %v109, %v109
    %v112 = vpack.c.bf16 %v110, %v110
    %v113 = vld [vmem:[%s3] sm:$0xf]
    %v114 = vld [vmem:[%s3 + $0x4] sm:$0xf]
    %v115 = vld [vmem:[%s3 + $0x8] sm:$0xf]
    %v116 = vld [vmem:[%s3 + $0xc] sm:$0xf]
    %v117 = vld [vmem:[%s3 + $0x10] sm:$0xf]
    %v118 = vld [vmem:[%s3 + $0x14] sm:$0xf]
    %v119 = vld [vmem:[%s3 + $0x18] sm:$0xf]
    %v120 = vld [vmem:[%s3 + $0x1c] sm:$0xf]
    %v121 = vld [vmem:[%s3 + $0x20] sm:$0xf]
    %v122 = vld [vmem:[%s3 + $0x24] sm:$0xf]
    %v123 = vld [vmem:[%s3 + $0x28] sm:$0xf]
    %v124 = vld [vmem:[%s3 + $0x2c] sm:$0xf]
    %v125 = vld [vmem:[%s3 + $0x30] sm:$0xf]
    %v126 = vld [vmem:[%s3 + $0x34] sm:$0xf]
    %v127 = vld [vmem:[%s3 + $0x38] sm:$0xf]
    %v128 = vld [vmem:[%s3 + $0x3c] sm:$0xf]
    %v129 = vld [vmem:[%s3 + $0x40] sm:$0xf]
    %v130 = vld [vmem:[%s3 + $0x44] sm:$0xf]
    %v131 = vld [vmem:[%s3 + $0x48] sm:$0xf]
    %v132 = vld [vmem:[%s3 + $0x4c] sm:$0xf]
    %v133 = vld [vmem:[%s3 + $0x50] sm:$0xf]
    %v134 = vld [vmem:[%s3 + $0x54] sm:$0xf]
    %v135 = vld [vmem:[%s3 + $0x58] sm:$0xf]
    %v136 = vld [vmem:[%s3 + $0x5c] sm:$0xf]
    %v137 = vld [vmem:[%s3 + $0x60] sm:$0xf]
    %v138 = vld [vmem:[%s3 + $0x64] sm:$0xf]
    %v139 = vld [vmem:[%s3 + $0x68] sm:$0xf]
    %v140 = vld [vmem:[%s3 + $0x6c] sm:$0xf]
    %v141 = vld [vmem:[%s3 + $0x70] sm:$0xf]
    %v142 = vld [vmem:[%s3 + $0x74] sm:$0xf]
    %v143 = vld [vmem:[%s3 + $0x78] sm:$0xf]
    %v144 = vld [vmem:[%s3 + $0x7c] sm:$0xf]
    %v145 = vld [vmem:[%s4] sm:$0x1]
    %v147 = vperm.slane %v145, 0
    %v181 = vunpack.c.l.b16 %v113
    %v182 = vunpack.c.l.b16 %v114
    %v183 = vunpack.c.l.b16 %v115
    %v184 = vunpack.c.l.b16 %v116
    %v185 = vunpack.c.l.b16 %v117
    %v186 = vunpack.c.l.b16 %v118
    %v187 = vunpack.c.l.b16 %v119
    %v188 = vunpack.c.l.b16 %v120
    %v189 = vunpack.c.l.b16 %v121
    %v190 = vunpack.c.l.b16 %v122
    %v191 = vunpack.c.l.b16 %v123
    %v192 = vunpack.c.l.b16 %v124
    %v193 = vunpack.c.l.b16 %v125
    %v194 = vunpack.c.l.b16 %v126
    %v195 = vunpack.c.l.b16 %v127
    %v196 = vunpack.c.l.b16 %v128
    %v197 = vunpack.c.l.b16 %v129
    %v198 = vunpack.c.l.b16 %v130
    %v199 = vunpack.c.l.b16 %v131
    %v200 = vunpack.c.l.b16 %v132
    %v201 = vunpack.c.l.b16 %v133
    %v202 = vunpack.c.l.b16 %v134
    %v203 = vunpack.c.l.b16 %v135
    %v204 = vunpack.c.l.b16 %v136
    %v205 = vunpack.c.l.b16 %v137
    %v206 = vunpack.c.l.b16 %v138
    %v207 = vunpack.c.l.b16 %v139
    %v208 = vunpack.c.l.b16 %v140
    %v209 = vunpack.c.l.b16 %v141
    %v210 = vunpack.c.l.b16 %v142
    %v211 = vunpack.c.l.b16 %v143
    %v212 = vunpack.c.l.b16 %v144
    %v213 = vpack.c.b16 %v182, %v181
    %v214 = vpack.c.b16 %v184, %v183
    %v215 = vpack.c.b16 %v186, %v185
    %v216 = vpack.c.b16 %v188, %v187
    %v217 = vpack.c.b16 %v190, %v189
    %v218 = vpack.c.b16 %v192, %v191
    %v219 = vpack.c.b16 %v194, %v193
    %v220 = vpack.c.b16 %v196, %v195
    %v221 = vpack.c.b16 %v198, %v197
    %v222 = vpack.c.b16 %v200, %v199
    %v223 = vpack.c.b16 %v202, %v201
    %v224 = vpack.c.b16 %v204, %v203
    %v225 = vpack.c.b16 %v206, %v205
    %v226 = vpack.c.b16 %v208, %v207
    %v227 = vpack.c.b16 %v210, %v209
    %v228 = vpack.c.b16 %v212, %v211
    %245 = vmatpush.bf16.msra.mxu0 %v220
    %246 = vmatpush.bf16.msra.mxu0 %v219
    %247 = vmatpush.bf16.msra.mxu0 %v218
    %248 = vmatpush.bf16.msra.mxu0 %v217
    %249 = vmatpush.bf16.msra.mxu0 %v216
    %250 = vmatpush.bf16.msra.mxu0 %v215
    %251 = vmatpush.bf16.msra.mxu0 %v214
    %252 = vmatpush.bf16.msra.mxu0 %v213
    %253 = vmatmul.bf16.gmra.mxu0 %v111
    %v254 = vpop.f32.mrf.mxu0
    %v255 = vadd.f32 %v147, %v254
    %v256 = vpop.f32.mrf.mxu0
    %257 = vdwg.mxu0
    %258 = vmatpush.bf16.msra.mxu0 %v228
    %259 = vmatpush.bf16.msra.mxu0 %v227
    %260 = vmatpush.bf16.msra.mxu0 %v226
    %261 = vmatpush.bf16.msra.mxu0 %v225
    %262 = vmatpush.bf16.msra.mxu0 %v224
    %263 = vmatpush.bf16.msra.mxu0 %v223
    %264 = vmatpush.bf16.msra.mxu0 %v222
    %265 = vmatpush.bf16.msra.mxu0 %v221
    %266 = vmatmul.bf16.gmra.mxu0 %v112
    %v267 = vpop.f32.mrf.mxu0
    %v268 = vadd.f32 %v255, %v267
    %v269 = vpop.f32.mrf.mxu0
    %270 = vdwg.mxu0
    %vm271 = vcmask 130048
    %272 = vst.msk [vmem:[#allocation2] sm:$0xff] %vm271, %v268
    // Predicated region
    $region22: #{tpu_custom_call.1} parent=1 // pred_check
      _
    $region23: #{tpu_custom_call.1} parent=1 // pred_check_branch
      %274 = sbr.rel (0) target = $region25
    $region24: #{tpu_custom_call.1} parent=1 // pred_region
      %276 = vsyncadd [#allocation3], 0
      %s278 = sshll.u32 [#allocation2], 4
      %s279 = int_to_ptr.vmem [resolvable:$true] %s278
      %s280 = sshll.u32 %s5, 4
      %s281 = int_to_ptr.hbm [resolvable:$true] %s280
      %283 = dma.vmem_to_hbm [thread:$0]  %s279, 128, %s281, [#allocation3]
    $region25: #{tpu_custom_call.1} parent=1 // pred_fallthru
      _
    // Predicated region
    $region26: #{tpu_custom_call.1} parent=1 // pred_check
      _
    $region27: #{tpu_custom_call.1} parent=1 // pred_check_branch
      %285 = sbr.rel (0) target = $region29
    $region28: #{tpu_custom_call.1} parent=1 // pred_region
      %287 = dma.done [#allocation3], 128
    $region29: #{tpu_custom_call.1} parent=1 // pred_fallthru
      _
    %288 = vsyncpa [#allocation3], 1

</llo_original>
